<compile_context>
chip_gen: v7x
topology: tpu7x:2x2x1
jax: 0.10.0
libtpu: 0.0.40
codegen_flags: <defaults>
</compile_context>

<pallas_src>
import jax
import jax.numpy as jnp
from jax.experimental import pallas as pl
from jax.experimental.pallas import tpu as pltpu

HIDDEN = 32
TILE_B = 8192  # batch lanes per grid step; multiple of 128 (sweepable 8192-16384)


def _default_act_dtype():
    """bf16 hidden activations on v6e/v7x (bf16 VALU); f32 on v2-v5 chips."""
    try:
        kind = jax.devices()[0].device_kind.lower()
    except Exception:
        return jnp.bfloat16
    for old in ("v2", "v3", "v4", "v5"):
        if old in kind:
            return jnp.float32
    return jnp.bfloat16


def _make_kernel(act_dtype):
    def kernel(
        x_ref,     # (1, TILE_B)  f32 input, batch on lanes
        wh_ref,    # (65, 32)     bf16: rows [0:32)=W1, [32:64)=W2, [64:65)=W3
        colv_ref,  # (32, 4)      act_dtype columns: [w0, b0, b1, b2]
        b3_ref,    # (1, 1)       f32 output bias
        o_ref,     # (1, TILE_B)  f32 lane-dense output
    ):
        # Single load of every operand per grid step.
        x = x_ref[...].astype(act_dtype)                 # (1, TILE_B)
        w1 = wh_ref[0:HIDDEN, :]                         # (32, 32) bf16
        w2 = wh_ref[HIDDEN:2 * HIDDEN, :]                # (32, 32) bf16
        w3 = wh_ref[2 * HIDDEN:2 * HIDDEN + 1, :]        # (1, 32)  bf16
        colv = colv_ref[...]                             # (32, 4)  act_dtype
        w0 = colv[:, 0:1]
        b0 = colv[:, 1:2]
        b1 = colv[:, 2:3]
        b2 = colv[:, 3:4]
        b3 = b3_ref[...]                                 # (1, 1)   f32

        # hidden0: Linear(1, 32) — contraction dim 1 => pure broadcast on VPU.
        h = w0 * x + b0                                  # (32, TILE_B)
        h = jnp.maximum(h, 0.2 * h)                      # LeakyReLU(0.2), 1 op

        # hidden1: Linear(32, 32). bf16 operands, f32 MXU accumulation,
        # downcast on pop; bias-add + leaky in act_dtype.
        h = jnp.dot(w1, h.astype(jnp.bfloat16),
                    preferred_element_type=jnp.float32).astype(act_dtype) + b1
        h = jnp.maximum(h, 0.2 * h)

        # hidden2: Linear(32, 32)
        h = jnp.dot(w2, h.astype(jnp.bfloat16),
                    preferred_element_type=jnp.float32).astype(act_dtype) + b2
        h = jnp.maximum(h, 0.2 * h)

        # out: Linear(32, 1) -> (1, TILE_B) lane-dense f32 logit.
        logit = jnp.dot(w3, h.astype(jnp.bfloat16),
                        preferred_element_type=jnp.float32) + b3

        # Sigmoid: exp + reciprocal both on the EUP slot (VPU stays free).
        o_ref[...] = pl.reciprocal(1.0 + jnp.exp(-logit), approx=True).astype(o_ref.dtype)

    return kernel


def discriminator_forward(x, params, tile_b=TILE_B, act_dtype=None):
    """x: (B, 1) float32. params: PyTorch-layout (out,in) weights, (out,1) biases."""
    if act_dtype is None:
        act_dtype = _default_act_dtype()

    B = x.shape[0]
    xt = x.reshape(1, B).astype(jnp.float32)   # batch onto the lane axis

    # Tile selection: round to a multiple of 128 (not next_power_of_2); for
    # batches that fit a single tile, split into >=2 grid steps so the
    # "parallel" axis can span both TensorCores on v7x.
    bp128 = int(pl.cdiv(B, 128)) * 128
    if bp128 > tile_b:
        tile = int(tile_b)
    elif bp128 >= 256:
        tile = int(pl.cdiv(bp128 // 2, 128)) * 128
    else:
        tile = 128
    grid_n = int(pl.cdiv(B, tile))
    bp = grid_n * tile
    if bp != B:
        xt = jnp.pad(xt, ((0, 0), (0, bp - B)))

    # Wrapper-side packing + pre-casting (no per-step casts, 3 operand pipelines).
    wh = jnp.concatenate(
        [params["w1"], params["w2"], params["w3"]], axis=0
    ).astype(jnp.bfloat16)                                           # (65, 32)
    colv = jnp.concatenate(
        [params["w0"], params["b0"], params["b1"], params["b2"]], axis=1
    ).astype(act_dtype)                                              # (32, 4)
    b3 = params["b3"].reshape(1, 1).astype(jnp.float32)              # (1, 1)

    def const_spec(shape):
        return pl.BlockSpec(shape, lambda i: (0, 0))

    in_specs = [
        pl.BlockSpec((1, tile), lambda i: (0, i)),   # x tile
        const_spec(wh.shape),                        # packed W1/W2/W3
        const_spec(colv.shape),                      # packed w0/b0/b1/b2
        const_spec(b3.shape),                        # output bias
    ]
    out_spec = pl.BlockSpec((1, tile), lambda i: (0, i))

    out = pl.pallas_call(
        _make_kernel(act_dtype),
        out_shape=jax.ShapeDtypeStruct((1, bp), jnp.float32),
        grid=(grid_n,),
        in_specs=in_specs,
        out_specs=out_spec,
        compiler_params=pltpu.CompilerParams(
            dimension_semantics=("parallel",),       # shard batch over TCs (v7x)
            vmem_limit_bytes=48 * 1024 * 1024,       # v7x-safe (<64 MiB), ample
        ),
    )(xt, wh, colv, b3)

    return out[0, :B].reshape(B, 1)


def init_params(key):
    """Deterministic init matching PyTorch nn.Linear (weight: (out,in), bias: (out,1))."""
    ks = jax.random.split(key, 8)

    def lin(kw, kb, fan_in, fan_out):
        bound = 1.0 / (fan_in ** 0.5)
        w = jax.random.uniform(kw, (fan_out, fan_in), jnp.float32, -bound, bound)
        b = jax.random.uniform(kb, (fan_out, 1), jnp.float32, -bound, bound)
        return w, b

    w0, b0 = lin(ks[0], ks[1], 1, HIDDEN)        # Linear(1, 32)
    w1, b1 = lin(ks[2], ks[3], HIDDEN, HIDDEN)   # Linear(32, 32)
    w2, b2 = lin(ks[4], ks[5], HIDDEN, HIDDEN)   # Linear(32, 32)
    w3, b3 = lin(ks[6], ks[7], HIDDEN, 1)        # Linear(32, 1)
    return {"w0": w0, "b0": b0, "w1": w1, "b1": b1,
            "w2": w2, "b2": b2, "w3": w3, "b3": b3}


def reference_forward(x, p):
    """Pure-JAX f32 reference (PyTorch semantics: y = x @ W.T + b)."""
    def leaky(v):
        return jnp.where(v > 0, v, 0.2 * v)

    h = leaky(x @ p["w0"].T + p["b0"].T)
    h = leaky(h @ p["w1"].T + p["b1"].T)
    h = leaky(h @ p["w2"].T + p["b2"].T)
    logit = h @ p["w3"].T + p["b3"].T
    return jax.nn.sigmoid(logit)


if __name__ == "__main__":
    key = jax.random.PRNGKey(0)
    k_params, k_x = jax.random.split(key)

    params = init_params(k_params)
    x = jax.random.normal(k_x, (8, 1), dtype=jnp.float32)   # batch=8, n_features=1

    out = jax.block_until_ready(discriminator_forward(x, params))
    ref = reference_forward(x, params)

    assert out.shape == (8, 1)
    # bf16 weights/activations + approx reciprocal vs f32 reference; outputs are
    # in (0, 1) so 2e-2 absolute tolerance is comfortably loose yet meaningful.
    assert jnp.allclose(out, ref, atol=2e-2, rtol=2e-2), (out, ref)

    print("KERNEL_OK")
</pallas_src>

<mosaic_0001>
module attributes {stable_mosaic.version = 11 : i64} {
  func.func @kernel(%arg0: i32, %arg1: memref<1x128xf32, #tpu.memory_space<vmem>>, %arg2: memref<65x32xbf16, #tpu.memory_space<vmem>>, %arg3: memref<32x4xbf16, #tpu.memory_space<vmem>>, %arg4: memref<1x1xf32, #tpu.memory_space<vmem>>, %arg5: memref<1x128xf32, #tpu.memory_space<vmem>>) attributes {dimension_semantics = [#tpu.dimension_semantics<parallel>], iteration_bounds = array<i64: 1>, scalar_prefetch = 0 : i64, scratch_operands = 0 : i64, tpu.core_type = #tpu.core_type<tc>, window_params = [{transform_indices = @transform_0, window_bounds = array<i64: 1, 128>}, {pipeline_mode = #tpu.pipeline_mode<synchronous>, transform_indices = @transform_1, window_bounds = array<i64: 65, 32>}, {pipeline_mode = #tpu.pipeline_mode<synchronous>, transform_indices = @transform_2, window_bounds = array<i64: 32, 4>}, {pipeline_mode = #tpu.pipeline_mode<synchronous>, transform_indices = @transform_3, window_bounds = array<i64: 1, 1>}, {transform_indices = @transform_4, window_bounds = array<i64: 1, 128>}]} {
    %c0 = arith.constant 0 : index
    %c0_0 = arith.constant 0 : index
    %0 = vector.load %arg1[%c0, %c0_0] : memref<1x128xf32, #tpu.memory_space<vmem>>, vector<1x128xf32>
    %1 = arith.truncf %0 : vector<1x128xf32> to vector<1x128xbf16>
    %c0_1 = arith.constant 0 : index
    %c0_2 = arith.constant 0 : index
    %2 = vector.load %arg2[%c0_1, %c0_2] : memref<65x32xbf16, #tpu.memory_space<vmem>>, vector<32x32xbf16>
    %c32 = arith.constant 32 : index
    %c0_3 = arith.constant 0 : index
    %3 = vector.load %arg2[%c32, %c0_3] : memref<65x32xbf16, #tpu.memory_space<vmem>>, vector<32x32xbf16>
    %c64 = arith.constant 64 : index
    %c0_4 = arith.constant 0 : index
    %4 = vector.load %arg2[%c64, %c0_4] : memref<65x32xbf16, #tpu.memory_space<vmem>>, vector<1x32xbf16>
    %c0_5 = arith.constant 0 : index
    %c0_6 = arith.constant 0 : index
    %5 = vector.load %arg3[%c0_5, %c0_6] : memref<32x4xbf16, #tpu.memory_space<vmem>>, vector<32x4xbf16>
    %6 = vector.extract_strided_slice %5 {offsets = [0, 0], sizes = [32, 1], strides = [1, 1]} : vector<32x4xbf16> to vector<32x1xbf16>
    %7 = vector.extract_strided_slice %5 {offsets = [0, 1], sizes = [32, 1], strides = [1, 1]} : vector<32x4xbf16> to vector<32x1xbf16>
    %8 = vector.extract_strided_slice %5 {offsets = [0, 2], sizes = [32, 1], strides = [1, 1]} : vector<32x4xbf16> to vector<32x1xbf16>
    %9 = vector.extract_strided_slice %5 {offsets = [0, 3], sizes = [32, 1], strides = [1, 1]} : vector<32x4xbf16> to vector<32x1xbf16>
    %c0_7 = arith.constant 0 : index
    %c0_8 = arith.constant 0 : index
    %10 = vector.load %arg4[%c0_7, %c0_8] : memref<1x1xf32, #tpu.memory_space<vmem>>, vector<1x1xf32>
    %11 = vector.broadcast %6 : vector<32x1xbf16> to vector<32x128xbf16>
    %12 = vector.broadcast %1 : vector<1x128xbf16> to vector<32x128xbf16>
    %13 = arith.mulf %11, %12 : vector<32x128xbf16>
    %14 = vector.broadcast %7 : vector<32x1xbf16> to vector<32x128xbf16>
    %15 = arith.addf %13, %14 : vector<32x128xbf16>
    %cst = arith.constant 2.001950e-01 : bf16
    %16 = vector.broadcast %cst : bf16 to vector<32x128xbf16>
    %17 = arith.mulf %16, %15 : vector<32x128xbf16>
    %18 = arith.maximumf %15, %17 : vector<32x128xbf16>
    %cst_9 = arith.constant dense<0.000000e+00> : vector<32x128xf32>
    %19 = tpu.matmul %2, %18, %cst_9 {dimension_numbers = #tpu.dot_dimension_numbers<[1], [0], [0], [1], [0, 0, 1, 1], [], []>} : vector<32x32xbf16>, vector<32x128xbf16>, vector<32x128xf32> -> vector<32x128xf32>
    %20 = arith.truncf %19 : vector<32x128xf32> to vector<32x128xbf16>
    %21 = vector.broadcast %8 : vector<32x1xbf16> to vector<32x128xbf16>
    %22 = arith.addf %20, %21 : vector<32x128xbf16>
    %cst_10 = arith.constant 2.001950e-01 : bf16
    %23 = vector.broadcast %cst_10 : bf16 to vector<32x128xbf16>
    %24 = arith.mulf %23, %22 : vector<32x128xbf16>
    %25 = arith.maximumf %22, %24 : vector<32x128xbf16>
    %cst_11 = arith.constant dense<0.000000e+00> : vector<32x128xf32>
    %26 = tpu.matmul %3, %25, %cst_11 {dimension_numbers = #tpu.dot_dimension_numbers<[1], [0], [0], [1], [0, 0, 1, 1], [], []>} : vector<32x32xbf16>, vector<32x128xbf16>, vector<32x128xf32> -> vector<32x128xf32>
    %27 = arith.truncf %26 : vector<32x128xf32> to vector<32x128xbf16>
    %28 = vector.broadcast %9 : vector<32x1xbf16> to vector<32x128xbf16>
    %29 = arith.addf %27, %28 : vector<32x128xbf16>
    %cst_12 = arith.constant 2.001950e-01 : bf16
    %30 = vector.broadcast %cst_12 : bf16 to vector<32x128xbf16>
    %31 = arith.mulf %30, %29 : vector<32x128xbf16>
    %32 = arith.maximumf %29, %31 : vector<32x128xbf16>
    %cst_13 = arith.constant dense<0.000000e+00> : vector<1x128xf32>
    %33 = tpu.matmul %4, %32, %cst_13 {dimension_numbers = #tpu.dot_dimension_numbers<[1], [0], [0], [1], [0, 0, 1, 1], [], []>} : vector<1x32xbf16>, vector<32x128xbf16>, vector<1x128xf32> -> vector<1x128xf32>
    %34 = vector.broadcast %10 : vector<1x1xf32> to vector<1x128xf32>
    %35 = arith.addf %33, %34 : vector<1x128xf32>
    %cst_14 = arith.constant 0.000000e+00 : f32
    %36 = vector.broadcast %cst_14 : f32 to vector<1x128xf32>
    %37 = arith.subf %36, %35 : vector<1x128xf32>
    %38 = math.exp %37 : vector<1x128xf32>
    %cst_15 = arith.constant 1.000000e+00 : f32
    %39 = vector.broadcast %cst_15 : f32 to vector<1x128xf32>
    %40 = arith.addf %39, %38 : vector<1x128xf32>
    %41 = tpu.reciprocal %40 {approx = true} : vector<1x128xf32> -> vector<1x128xf32>
    %c0_16 = arith.constant 0 : index
    %c0_17 = arith.constant 0 : index
    %42 = vector.load %arg5[%c0_16, %c0_17] : memref<1x128xf32, #tpu.memory_space<vmem>>, vector<1x128xf32>
    tpu.vector_store %arg5[%c0_16, %c0_17], %41 {strides = array<i32>} : memref<1x128xf32, #tpu.memory_space<vmem>>, vector<1x128xf32>,
    return
  }
  func.func @transform_0(%arg0: i32) -> (i32, i32) {
    %c0_i32 = arith.constant 0 : i32
    %c0_i32_0 = arith.constant 0 : i32
    return %c0_i32, %arg0 : i32, i32
  }
  func.func @transform_1(%arg0: i32) -> (i32, i32) {
    %c0_i32 = arith.constant 0 : i32
    %c0_i32_0 = arith.constant 0 : i32
    %c0_i32_1 = arith.constant 0 : i32
    return %c0_i32, %c0_i32_0 : i32, i32
  }
  func.func @transform_2(%arg0: i32) -> (i32, i32) {
    %c0_i32 = arith.constant 0 : i32
    %c0_i32_0 = arith.constant 0 : i32
    %c0_i32_1 = arith.constant 0 : i32
    return %c0_i32, %c0_i32_0 : i32, i32
  }
  func.func @transform_3(%arg0: i32) -> (i32, i32) {
    %c0_i32 = arith.constant 0 : i32
    %c0_i32_0 = arith.constant 0 : i32
    %c0_i32_1 = arith.constant 0 : i32
    return %c0_i32, %c0_i32_0 : i32, i32
  }
  func.func @transform_4(%arg0: i32) -> (i32, i32) {
    %c0_i32 = arith.constant 0 : i32
    %c0_i32_0 = arith.constant 0 : i32
    return %c0_i32, %arg0 : i32, i32
  }
}

</mosaic_0001>

<llo_original>
// kernel: tpu_custom_call.1
$region0: #{tpu_custom_call.1}
  #allocation0 [shape = 'u32[]', space=smem, size = 0x4, offset = 0x4, fixed_abs, tag = 'smem constant byte address 0x4 - core index']
  #allocation1 [shape = 'u32[144,128]{1,0:T(1,128)}', space=vmem, size = 0x12000, scoped, tag = 'internal scratch']
  #allocation2 [shape = 'f32[1,1]{1,0:T(1,128)S(1)}', space=vmem, size = 0x200, scoped, tag = 'scoped memory for tpu_custom_call.1']
  %s0 = inlined_call_operand.vmem [shape: f32[1,128], index: 0, kind: input, shape index: {}]
  %s1 = inlined_call_operand.vmem [shape: bf16[65,32], index: 1, kind: input, shape index: {}]
  %s2 = inlined_call_operand.vmem [shape: bf16[32,4], index: 2, kind: input, shape index: {}]
  %s3 = inlined_call_operand.<no memory space> [shape: f32[1,1], index: 3, kind: input, shape index: {}]
  %s4 = inlined_call_operand.hbm [shape: f32[1,128], index: 4, kind: output, shape index: {}]
  %s5 = sld [smem:[#allocation0]]
  $region26: #{tpu_custom_call.1} parent=0
    _
  %s7 = ssub.s32 1, %s5
  %s8 = scalar_select 0, %s7, %s5
  %v9 = vstv %s3
  %10 = vst [vmem:[#allocation2] sm:$0x1] %v9
  $region1: #{tpu_custom_call.1} parent=0
    #allocation3 [shape = 'u8[512]{0}', space=vmem, size = 0x400, scoped, tag = 'output window, operand 0, single buffered']
    #allocation4 [shape = 's32[1]{0}', space=sflag, size = 0x4, scoped, tag = 'scoped memory for tpu_custom_call.1']
    %11 = vsyncpa [#allocation4], 0
    // Predicated region
    $region2: #{tpu_custom_call.1} parent=1 // pred_check
      _
    $region3: #{tpu_custom_call.1} parent=1 // pred_check_branch
      %13 = sbr.rel (0) target = $region5
    $region4: #{tpu_custom_call.1} parent=1 // pred_region
      _
    $region5: #{tpu_custom_call.1} parent=1 // pred_fallthru
      _
    // Predicated region
    $region6: #{tpu_custom_call.1} parent=1 // pred_check
      _
    $region7: #{tpu_custom_call.1} parent=1 // pred_check_branch
      %15 = sbr.rel (0) target = $region9
    $region8: #{tpu_custom_call.1} parent=1 // pred_region
      _
    $region9: #{tpu_custom_call.1} parent=1 // pred_fallthru
      _
    // Predicated region
    $region10: #{tpu_custom_call.1} parent=1 // pred_check
      _
    $region11: #{tpu_custom_call.1} parent=1 // pred_check_branch
      %17 = sbr.rel (0) target = $region13
    $region12: #{tpu_custom_call.1} parent=1 // pred_region
      _
    $region13: #{tpu_custom_call.1} parent=1 // pred_fallthru
      _
    // Predicated region
    $region14: #{tpu_custom_call.1} parent=1 // pred_check
      _
    $region15: #{tpu_custom_call.1} parent=1 // pred_check_branch
      %19 = sbr.rel (0) target = $region17
    $region16: #{tpu_custom_call.1} parent=1 // pred_region
      _
    $region17: #{tpu_custom_call.1} parent=1 // pred_fallthru
      _
    %v22 = vld [vmem:[%s0] sm:$0x1]
    %v23 = vpack.c.bf16 %v22, %v22
    %v24 = vld [vmem:[%s1] sm:$0xf]
    %v25 = vld [vmem:[%s1 + $0x4] sm:$0xf]
    %v26 = vld [vmem:[%s1 + $0x8] sm:$0xf]
    %v27 = vld [vmem:[%s1 + $0xc] sm:$0xf]
    %v28 = vld [vmem:[%s1 + $0x10] sm:$0xf]
    %v29 = vld [vmem:[%s1 + $0x14] sm:$0xf]
    %v30 = vld [vmem:[%s1 + $0x18] sm:$0xf]
    %v31 = vld [vmem:[%s1 + $0x1c] sm:$0xf]
    %v32 = vld [vmem:[%s1 + $0x20] sm:$0x1]
    %v33 = vld [vmem:[%s2] sm:$0xf]
    %v34 = vld [vmem:[%s2 + $0x4] sm:$0xf]
    %v35 = vld [vmem:[%s2 + $0x8] sm:$0xf]
    %v36 = vld [vmem:[%s2 + $0xc] sm:$0xf]
    %v37 = vld [vmem:[#allocation2] sm:$0x1]
    %39 = vset.pattern.permute.xlu0 0
    %40 = vperm.xlu0 %39, %v33
    %v41 = vpop.permute.xlu0 %40
    %v44 = vunpack.c.l.s4 839922192
    %v45 = vunpack.c.0.s8 %v44
    %v46 = vlaneseq
    %v47 = vshrl.u32 %v46, 7
    %v48 = vsub.s32 %v45, %v47
    %v49 = vrot.slane %v41, %v48
    %51 = vset.pattern.permute.xlu0 0
    %52 = vperm.xlu0 %51, %v34
    %v53 = vpop.permute.xlu0 %52
    %v56 = vunpack.c.l.s4 839922192
    %v57 = vunpack.c.0.s8 %v56
    %v58 = vlaneseq
    %v59 = vshrl.u32 %v58, 7
    %v60 = vsub.s32 %v57, %v59
    %v61 = vrot.slane %v53, %v60
    %63 = vset.pattern.permute.xlu0 0
    %64 = vperm.xlu0 %63, %v35
    %v65 = vpop.permute.xlu0 %64
    %v68 = vunpack.c.l.s4 839922192
    %v69 = vunpack.c.0.s8 %v68
    %v70 = vlaneseq
    %v71 = vshrl.u32 %v70, 7
    %v72 = vsub.s32 %v69, %v71
    %v73 = vrot.slane %v65, %v72
    %75 = vset.pattern.permute.xlu0 0
    %76 = vperm.xlu0 %75, %v36
    %v77 = vpop.permute.xlu0 %76
    %v80 = vunpack.c.l.s4 839922192
    %v81 = vunpack.c.0.s8 %v80
    %v82 = vlaneseq
    %v83 = vshrl.u32 %v82, 7
    %v84 = vsub.s32 %v81, %v83
    %v85 = vrot.slane %v77, %v84
    %v87 = vpack.i.b16 %v23, %v23
    %v89 = vlaneseq
    %v90 = vshrl.u32 %v89, 7
    %v91 = vsub.s32 0, %v90
    %v92 = vrot.slane %v87, %v91
    %v94 = vunpack.c.l.b16 %v92
    %v95 = vpack.c.b16 %v94, %v94
    %v97 = vmul.bf16 %v49, %v95
    %v98 = vmul.bf16 %v61, %v95
    %v99 = vmul.bf16 %v73, %v95
    %v100 = vmul.bf16 %v85, %v95
    %101 = vset.pattern.permute.xlu0 1
    %102 = vperm.xlu0 %101, %v33
    %v103 = vpop.permute.xlu0 %102
    %v106 = vunpack.c.l.s4 839922192
    %v107 = vunpack.c.0.s8 %v106
    %v108 = vlaneseq
    %v109 = vshrl.u32 %v108, 7
    %v110 = vsub.s32 %v107, %v109
    %v111 = vrot.slane %v103, %v110
    %112 = vset.pattern.permute.xlu0 1
    %113 = vperm.xlu0 %112, %v34
    %v114 = vpop.permute.xlu0 %113
    %v117 = vunpack.c.l.s4 839922192
    %v118 = vunpack.c.0.s8 %v117
    %v119 = vlaneseq
    %v120 = vshrl.u32 %v119, 7
    %v121 = vsub.s32 %v118, %v120
    %v122 = vrot.slane %v114, %v121
    %123 = vset.pattern.permute.xlu0 1
    %124 = vperm.xlu0 %123, %v35
    %v125 = vpop.permute.xlu0 %124
    %v128 = vunpack.c.l.s4 839922192
    %v129 = vunpack.c.0.s8 %v128
    %v130 = vlaneseq
    %v131 = vshrl.u32 %v130, 7
    %v132 = vsub.s32 %v129, %v131
    %v133 = vrot.slane %v125, %v132
    %134 = vset.pattern.permute.xlu0 1
    %135 = vperm.xlu0 %134, %v36
    %v136 = vpop.permute.xlu0 %135
    %v139 = vunpack.c.l.s4 839922192
    %v140 = vunpack.c.0.s8 %v139
    %v141 = vlaneseq
    %v142 = vshrl.u32 %v141, 7
    %v143 = vsub.s32 %v140, %v142
    %v144 = vrot.slane %v136, %v143
    %v145 = vadd.bf16 %v97, %v111
    %v146 = vadd.bf16 %v98, %v122
    %v147 = vadd.bf16 %v99, %v133
    %v148 = vadd.bf16 %v100, %v144
    %v149 = vmul.bf16 %v145, 1045249613
    %v150 = vmul.bf16 %v146, 1045249613
    %v151 = vmul.bf16 %v147, 1045249613
    %v152 = vmul.bf16 %v148, 1045249613
    %v153 = vmax.bf16 %v145, %v149
    %v154 = vmax.bf16 %v146, %v150
    %v155 = vmax.bf16 %v147, %v151
    %v156 = vmax.bf16 %v148, %v152
    %v161 = vunpack.c.l.b16 %v24
    %v162 = vunpack.c.l.b16 %v25
    %v163 = vunpack.c.l.b16 %v26
    %v164 = vunpack.c.l.b16 %v27
    %v165 = vpack.c.b16 %v162, %v161
    %v166 = vpack.c.b16 %v164, %v163
    %v171 = vunpack.c.l.b16 %v153
    %v172 = vunpack.c.l.b16 %v154
    %v173 = vunpack.c.l.b16 %v155
    %v174 = vunpack.c.l.b16 %v156
    %v175 = vpack.c.b16 %v172, %v171
    %v176 = vpack.c.b16 %v174, %v173
    %vm179 = vcmask 261120
    %v181 = vsel %vm179, %v165, 0
    %v184 = vsel %vm179, %v166, 0
    %186 = vmatprep.subr.bf16.mxu0 0
    %187 = vmatpush1.bf16.msra.mxu0 %v175
    %188 = vmatprep.subr.bf16.mxu0 0
    %189 = vmatpush1.bf16.msra.mxu0 %v176
    %190 = vmatprep.subr.bf16.mxu0 0
    %191 = vmatpush1.bf16.msra.mxu0 0
    %192 = vmatprep.subr.bf16.mxu0 0
    %193 = vmatpush1.bf16.msra.mxu0 0
    %194 = vmatprep.subr.bf16.mxu0 0
    %195 = vmatpush1.bf16.msra.mxu0 0
    %196 = vmatprep.subr.bf16.mxu0 0
    %197 = vmatpush1.bf16.msra.mxu0 0
    %198 = vmatprep.subr.bf16.mxu0 0
    %199 = vmatpush1.bf16.msra.mxu0 0
    %200 = vmatprep.subr.bf16.mxu0 0
    %201 = vmatpush1.bf16.msra.mxu0 0
    %202 = vmatprep.subr.bf16.mxu0 0
    %203 = vmatpush1.bf16.msra.mxu0 0
    %204 = vmatprep.subr.bf16.mxu0 0
    %205 = vmatpush1.bf16.msra.mxu0 0
    %206 = vmatprep.subr.bf16.mxu0 0
    %207 = vmatpush1.bf16.msra.mxu0 0
    %208 = vmatprep.subr.bf16.mxu0 0
    %209 = vmatpush1.bf16.msra.mxu0 0
    %210 = vmatprep.subr.bf16.mxu0 0
    %211 = vmatpush1.bf16.msra.mxu0 0
    %212 = vmatprep.subr.bf16.mxu0 0
    %213 = vmatpush1.bf16.msra.mxu0 0
    %214 = vmatprep.subr.bf16.mxu0 0
    %215 = vmatpush1.bf16.msra.mxu0 0
    %216 = vmatprep.subr.bf16.mxu0 0
    %217 = vmatpush1.bf16.msra.mxu0 0
    %218 = vmatprep.mubr.bf16.mxu0 0
    %219 = vmatmul.mubr.bf16.gmra.mrb[0].mxu0 %v181
    %v220 = vpop.f32.mrb[0].mxu0
    %v221 = vadd.f32 0.0, %v220
    %v222 = vpop.f32.mrb[0].mxu0
    %v223 = vpop.f32.mrb[0].mxu0
    %v224 = vadd.f32 0.0, %v223
    %v225 = vpop.f32.mrb[0].mxu0
    %226 = vmatprep.mubr.bf16.mxu0 0
    %227 = vmatmul.mubr.bf16.gmra.mrb[0].mxu0 %v184
    %v228 = vpop.f32.mrb[0].mxu0
    %v229 = vadd.f32 0.0, %v228
    %v230 = vpop.f32.mrb[0].mxu0
    %v231 = vpop.f32.mrb[0].mxu0
    %v232 = vadd.f32 0.0, %v231
    %v233 = vpop.f32.mrb[0].mxu0
    %234 = vdwg.mxu0
    %v235 = vpack.c.bf16 %v224, %v221
    %v236 = vpack.c.bf16 %v232, %v229
    %237 = vset.pattern.permute.xlu0 2
    %238 = vperm.xlu0 %237, %v33
    %v239 = vpop.permute.xlu0 %238
    %v242 = vunpack.c.l.s4 839922192
    %v243 = vunpack.c.0.s8 %v242
    %v244 = vlaneseq
    %v245 = vshrl.u32 %v244, 7
    %v246 = vsub.s32 %v243, %v245
    %v247 = vrot.slane %v239, %v246
    %248 = vset.pattern.permute.xlu0 2
    %249 = vperm.xlu0 %248, %v34
    %v250 = vpop.permute.xlu0 %249
    %v253 = vunpack.c.l.s4 839922192
    %v254 = vunpack.c.0.s8 %v253
    %v255 = vlaneseq
    %v256 = vshrl.u32 %v255, 7
    %v257 = vsub.s32 %v254, %v256
    %v258 = vrot.slane %v250, %v257
    %259 = vset.pattern.permute.xlu0 2
    %260 = vperm.xlu0 %259, %v35
    %v261 = vpop.permute.xlu0 %260
    %v264 = vunpack.c.l.s4 839922192
    %v265 = vunpack.c.0.s8 %v264
    %v266 = vlaneseq
    %v267 = vshrl.u32 %v266, 7
    %v268 = vsub.s32 %v265, %v267
    %v269 = vrot.slane %v261, %v268
    %270 = vset.pattern.permute.xlu0 2
    %271 = vperm.xlu0 %270, %v36
    %v272 = vpop.permute.xlu0 %271
    %v275 = vunpack.c.l.s4 839922192
    %v276 = vunpack.c.0.s8 %v275
    %v277 = vlaneseq
    %v278 = vshrl.u32 %v277, 7
    %v279 = vsub.s32 %v276, %v278
    %v280 = vrot.slane %v272, %v279
    %v285 = vunpack.c.l.b16 %v247
    %v286 = vunpack.c.l.b16 %v258
    %v287 = vunpack.c.l.b16 %v269
    %v288 = vunpack.c.l.b16 %v280
    %v289 = vpack.c.b16 %v286, %v285
    %v290 = vpack.c.b16 %v288, %v287
    %v293 = vadd.bf16 %v235, %v289
    %v294 = vadd.bf16 %v236, %v290
    %v295 = vmul.bf16 %v293, 1045249613
    %v296 = vmul.bf16 %v294, 1045249613
    %v297 = vmax.bf16 %v293, %v295
    %v298 = vmax.bf16 %v294, %v296
    %v303 = vunpack.c.l.b16 %v28
    %v304 = vunpack.c.l.b16 %v29
    %v305 = vunpack.c.l.b16 %v30
    %v306 = vunpack.c.l.b16 %v31
    %v307 = vpack.c.b16 %v304, %v303
    %v308 = vpack.c.b16 %v306, %v305
    %v310 = vsel %vm179, %v307, 0
    %v313 = vsel %vm179, %v308, 0
    %315 = vmatprep.subr.bf16.mxu0 0
    %316 = vmatpush1.bf16.msra.mxu0 %v297
    %317 = vmatprep.subr.bf16.mxu0 0
    %318 = vmatpush1.bf16.msra.mxu0 %v298
    %319 = vmatprep.subr.bf16.mxu0 0
    %320 = vmatpush1.bf16.msra.mxu0 0
    %321 = vmatprep.subr.bf16.mxu0 0
    %322 = vmatpush1.bf16.msra.mxu0 0
    %323 = vmatprep.subr.bf16.mxu0 0
    %324 = vmatpush1.bf16.msra.mxu0 0
    %325 = vmatprep.subr.bf16.mxu0 0
    %326 = vmatpush1.bf16.msra.mxu0 0
    %327 = vmatprep.subr.bf16.mxu0 0
    %328 = vmatpush1.bf16.msra.mxu0 0
    %329 = vmatprep.subr.bf16.mxu0 0
    %330 = vmatpush1.bf16.msra.mxu0 0
    %331 = vmatprep.subr.bf16.mxu0 0
    %332 = vmatpush1.bf16.msra.mxu0 0
    %333 = vmatprep.subr.bf16.mxu0 0
    %334 = vmatpush1.bf16.msra.mxu0 0
    %335 = vmatprep.subr.bf16.mxu0 0
    %336 = vmatpush1.bf16.msra.mxu0 0
    %337 = vmatprep.subr.bf16.mxu0 0
    %338 = vmatpush1.bf16.msra.mxu0 0
    %339 = vmatprep.subr.bf16.mxu0 0
    %340 = vmatpush1.bf16.msra.mxu0 0
    %341 = vmatprep.subr.bf16.mxu0 0
    %342 = vmatpush1.bf16.msra.mxu0 0
    %343 = vmatprep.subr.bf16.mxu0 0
    %344 = vmatpush1.bf16.msra.mxu0 0
    %345 = vmatprep.subr.bf16.mxu0 0
    %346 = vmatpush1.bf16.msra.mxu0 0
    %347 = vmatprep.mubr.bf16.mxu0 0
    %348 = vmatmul.mubr.bf16.gmra.mrb[0].mxu0 %v310
    %v349 = vpop.f32.mrb[0].mxu0
    %v350 = vadd.f32 0.0, %v349
    %v351 = vpop.f32.mrb[0].mxu0
    %v352 = vpop.f32.mrb[0].mxu0
    %v353 = vadd.f32 0.0, %v352
    %v354 = vpop.f32.mrb[0].mxu0
    %355 = vmatprep.mubr.bf16.mxu0 0
    %356 = vmatmul.mubr.bf16.gmra.mrb[0].mxu0 %v313
    %v357 = vpop.f32.mrb[0].mxu0
    %v358 = vadd.f32 0.0, %v357
    %v359 = vpop.f32.mrb[0].mxu0
    %v360 = vpop.f32.mrb[0].mxu0
    %v361 = vadd.f32 0.0, %v360
    %v362 = vpop.f32.mrb[0].mxu0
    %363 = vdwg.mxu0
    %v364 = vpack.c.bf16 %v353, %v350
    %v365 = vpack.c.bf16 %v361, %v358
    %366 = vset.pattern.permute.xlu0 3
    %367 = vperm.xlu0 %366, %v33
    %v368 = vpop.permute.xlu0 %367
    %v371 = vunpack.c.l.s4 839922192
    %v372 = vunpack.c.0.s8 %v371
    %v373 = vlaneseq
    %v374 = vshrl.u32 %v373, 7
    %v375 = vsub.s32 %v372, %v374
    %v376 = vrot.slane %v368, %v375
    %377 = vset.pattern.permute.xlu0 3
    %378 = vperm.xlu0 %377, %v34
    %v379 = vpop.permute.xlu0 %378
    %v382 = vunpack.c.l.s4 839922192
    %v383 = vunpack.c.0.s8 %v382
    %v384 = vlaneseq
    %v385 = vshrl.u32 %v384, 7
    %v386 = vsub.s32 %v383, %v385
    %v387 = vrot.slane %v379, %v386
    %388 = vset.pattern.permute.xlu0 3
    %389 = vperm.xlu0 %388, %v35
    %v390 = vpop.permute.xlu0 %389
    %v393 = vunpack.c.l.s4 839922192
    %v394 = vunpack.c.0.s8 %v393
    %v395 = vlaneseq
    %v396 = vshrl.u32 %v395, 7
    %v397 = vsub.s32 %v394, %v396
    %v398 = vrot.slane %v390, %v397
    %399 = vset.pattern.permute.xlu0 3
    %400 = vperm.xlu0 %399, %v36
    %v401 = vpop.permute.xlu0 %400
    %v404 = vunpack.c.l.s4 839922192
    %v405 = vunpack.c.0.s8 %v404
    %v406 = vlaneseq
    %v407 = vshrl.u32 %v406, 7
    %v408 = vsub.s32 %v405, %v407
    %v409 = vrot.slane %v401, %v408
    %v414 = vunpack.c.l.b16 %v376
    %v415 = vunpack.c.l.b16 %v387
    %v416 = vunpack.c.l.b16 %v398
    %v417 = vunpack.c.l.b16 %v409
    %v418 = vpack.c.b16 %v415, %v414
    %v419 = vpack.c.b16 %v417, %v416
    %v422 = vadd.bf16 %v364, %v418
    %v423 = vadd.bf16 %v365, %v419
    %v424 = vmul.bf16 %v422, 1045249613
    %v425 = vmul.bf16 %v423, 1045249613
    %v426 = vmax.bf16 %v422, %v424
    %v427 = vmax.bf16 %v423, %v425
    %429 = vset.pattern.permute.xlu0 0
    %430 = vperm.xlu0 %429, %v37
    %v431 = vpop.permute.xlu0 %430
    %v433 = vlaneseq
    %v434 = vshrl.u32 %v433, 7
    %v435 = vsub.s32 0, %v434
    %v436 = vrot.slane %v431, %v435
    %v438 = vsel %vm179, %v32, 0
    %440 = vmatprep.subr.bf16.mxu0 0
    %441 = vmatpush1.bf16.msra.mxu0 %v426
    %442 = vmatprep.subr.bf16.mxu0 0
    %443 = vmatpush1.bf16.msra.mxu0 %v427
    %444 = vmatprep.subr.bf16.mxu0 0
    %445 = vmatpush1.bf16.msra.mxu0 0
    %446 = vmatprep.subr.bf16.mxu0 0
    %447 = vmatpush1.bf16.msra.mxu0 0
    %448 = vmatprep.subr.bf16.mxu0 0
    %449 = vmatpush1.bf16.msra.mxu0 0
    %450 = vmatprep.subr.bf16.mxu0 0
    %451 = vmatpush1.bf16.msra.mxu0 0
    %452 = vmatprep.subr.bf16.mxu0 0
    %453 = vmatpush1.bf16.msra.mxu0 0
    %454 = vmatprep.subr.bf16.mxu0 0
    %455 = vmatpush1.bf16.msra.mxu0 0
    %456 = vmatprep.subr.bf16.mxu0 0
    %457 = vmatpush1.bf16.msra.mxu0 0
    %458 = vmatprep.subr.bf16.mxu0 0
    %459 = vmatpush1.bf16.msra.mxu0 0
    %460 = vmatprep.subr.bf16.mxu0 0
    %461 = vmatpush1.bf16.msra.mxu0 0
    %462 = vmatprep.subr.bf16.mxu0 0
    %463 = vmatpush1.bf16.msra.mxu0 0
    %464 = vmatprep.subr.bf16.mxu0 0
    %465 = vmatpush1.bf16.msra.mxu0 0
    %466 = vmatprep.subr.bf16.mxu0 0
    %467 = vmatpush1.bf16.msra.mxu0 0
    %468 = vmatprep.subr.bf16.mxu0 0
    %469 = vmatpush1.bf16.msra.mxu0 0
    %470 = vmatprep.subr.bf16.mxu0 0
    %471 = vmatpush1.bf16.msra.mxu0 0
    %472 = vmatprep.mubr.bf16.mxu0 0
    %473 = vmatmul.mubr.bf16.gmra.mrb[0].mxu0 %v438
    %v474 = vpop.f32.mrb[0].mxu0
    %v475 = vadd.f32 %v436, %v474
    %v476 = vpop.f32.mrb[0].mxu0
    %v477 = vpop.f32.mrb[0].mxu0
    %v478 = vpop.f32.mrb[0].mxu0
    %479 = vdwg.mxu0
    %v480 = vsub.f32 0.0, %v475
    %v481 = vmul.f32 %v480, 1.442695
    %v482 = vpow.pop %v481
    %v483 = vadd.f32 %v482, 1.0
    %v484 = vrcp.pop %v483
    %485 = vst [vmem:[#allocation3] sm:$0x1] %v484
    // Predicated region
    $region18: #{tpu_custom_call.1} parent=1 // pred_check
      _
    $region19: #{tpu_custom_call.1} parent=1 // pred_check_branch
      %487 = sbr.rel (0) target = $region21
    $region20: #{tpu_custom_call.1} parent=1 // pred_region
      %s489 = ssub.s32 16, 16
      %490 = vsyncadd [#allocation4], %s489
      %s492 = sshll.u32 [#allocation3], 4
      %s493 = int_to_ptr.vmem [resolvable:$true] %s492
      %495 = dma.vmem_to_hbm [thread:$0]  %s493, 16, %s4, [#allocation4]
    $region21: #{tpu_custom_call.1} parent=1 // pred_fallthru
      _
    // Predicated region
    $region22: #{tpu_custom_call.1} parent=1 // pred_check
      _
    $region23: #{tpu_custom_call.1} parent=1 // pred_check_branch
      %497 = sbr.rel (0) target = $region25
    $region24: #{tpu_custom_call.1} parent=1 // pred_region
      %498 = dma.done [#allocation4], 16
    $region25: #{tpu_custom_call.1} parent=1 // pred_fallthru
      _
    %499 = vsyncpa [#allocation4], 1

</llo_original>
